<compile_context>
chip_gen: v5e
topology: v5e:2x2
jax: 0.10.0
libtpu: 0.0.40
codegen_flags: <defaults>
</compile_context>

<pallas_src>
import jax
import jax.numpy as jnp
from jax.experimental import pallas as pl
from jax.experimental.pallas import tpu as pltpu

LANE = 128     # lane width (last-dim alignment)
SUBLANE = 8    # sublane count (second-to-last-dim alignment)
OUT_W = 128    # fc3 width used only inside the kernel (VMEM/MXU, no HBM cost)


def _cdiv(a, b):
    return (a + b - 1) // b


def _round_up(n, m):
    return ((n + m - 1) // m) * m


def _vmem_capacity_bytes():
    try:
        return int(getattr(pltpu.get_tpu_info(), "vmem_capacity_bytes", 64 << 20))
    except Exception:
        return 64 << 20  # conservative default (v7x per-core VMEM)


def _mlp_kernel(x_ref, w1_ref, b1_ref, w2_ref, b2_ref, w3_ref, b3_ref, o_ref):
    # fc1 + ReLU (dropout1 == identity at inference); K = true input_dim.
    h1 = jnp.dot(x_ref[...], w1_ref[...], preferred_element_type=jnp.float32)
    h1 = jnp.maximum(h1 + b1_ref[...], 0.0)                  # f32 bias + ReLU (VPU)
    # fc2 + ReLU (dropout2 == identity at inference).
    h2 = jnp.dot(h1.astype(w2_ref.dtype), w2_ref[...],
                 preferred_element_type=jnp.float32)
    h2 = jnp.maximum(h2 + b2_ref[...], 0.0)
    # fc3: OUT_W-wide matmul (only column 0 is real; padded cols are exact 0),
    # then pack column 0 into a lane-dense (1, TB) row via an XLU transpose.
    o = jnp.dot(h2.astype(w3_ref.dtype), w3_ref[...],
                preferred_element_type=jnp.float32)
    o = o + b3_ref[...]                                       # (TB, OUT_W) f32
    o_ref[...] = jnp.transpose(o)[0:1, :].astype(o_ref.dtype)  # (1, TB) packed


def prepare_params(params, compute_dtype=jnp.bfloat16):
    """Pad weights/biases once to MXU/vreg-aligned shapes.

    Matmul operands go to `compute_dtype` (bf16 default: halves streamed HBM
    bytes, native MXU path); biases stay f32 (post-accumulation add, VPU-safe
    on v5e).  Only N/output dims are padded; w1's K dim stays the true
    input_dim so x is streamed unpadded.  Zero padding keeps padded columns
    contributing exactly 0.
    """
    w1, b1 = params["w1"], params["b1"]   # (D, H1), (1, H1)
    w2, b2 = params["w2"], params["b2"]   # (H1, H2), (1, H2)
    w3, b3 = params["w3"], params["b3"]   # (H2, 1),  (1, 1)
    d, h1 = w1.shape
    h2 = w2.shape[1]
    h1_p = _round_up(h1, LANE)
    h2_p = _round_up(h2, LANE)

    def pad2(a, rows, cols, dtype):
        a = jnp.pad(a, ((0, rows - a.shape[0]), (0, cols - a.shape[1])))
        return a.astype(dtype)

    padded = {
        "w1": pad2(w1, d, h1_p, compute_dtype),   # K unpadded, N padded
        "b1": pad2(b1, 1, h1_p, jnp.float32),
        "w2": pad2(w2, h1_p, h2_p, compute_dtype),
        "b2": pad2(b2, 1, h2_p, jnp.float32),
        "w3": pad2(w3, h2_p, OUT_W, compute_dtype),
        "b3": pad2(b3, 1, OUT_W, jnp.float32),
    }
    meta = {"input_dim": d, "out_dim": w3.shape[1], "compute_dtype": compute_dtype}
    return padded, meta


def dnn_regressor_forward(x, padded_params, meta, max_batch_tile=2048):
    """x: (B, input_dim) float32 -> (B, 1) float32."""
    w1, b1 = padded_params["w1"], padded_params["b1"]
    w2, b2 = padded_params["w2"], padded_params["b2"]
    w3, b3 = padded_params["w3"], padded_params["b3"]
    B, D = x.shape
    assert D == meta["input_dim"]
    H1_pad = w1.shape[1]
    H2_pad = w2.shape[1]
    compute_dtype = meta["compute_dtype"]
    c_itemsize = jnp.dtype(compute_dtype).itemsize

    # Batch tile: derived from B (last tile wastes < one alignment unit) and
    # lane-aligned (128) when large so the packed output store is lane-dense.
    num_tiles = _cdiv(B, max_batch_tile)
    tb_raw = _cdiv(B, num_tiles)
    align = LANE if tb_raw >= LANE else SUBLANE
    TB = _round_up(tb_raw, align)

    # Generation-aware VMEM budget (v7x: 64 MiB, v5e/v6e: 128 MiB physical).
    cap = _vmem_capacity_bytes()
    weight_bytes = sum(int(a.size) * a.dtype.itemsize
                       for a in (w1, b1, w2, b2, w3, b3))
    resident_bytes = 2 * weight_bytes             # worst case: double-buffered
    if resident_bytes > cap // 2:
        # TODO(synk): K/N-tiled grid fallback for non-resident weights.
        raise NotImplementedError(
            "hidden sizes too large for the resident-weight kernel on this TPU")

    def tile_bytes(tb):
        return (2 * tb * D * c_itemsize                      # x (double-buffered)
                + 2 * tb * 4                                  # packed out (double-buf)
                + tb * (H1_pad + H2_pad + 2 * OUT_W) * 4      # f32 intermediates
                + tb * (H1_pad + H2_pad) * c_itemsize)        # bf16 operand casts

    budget = (3 * cap) // 4
    while TB > align and resident_bytes + tile_bytes(TB) + (2 << 20) > budget:
        TB = max(align, _round_up(TB // 2, align))

    num_tiles = _cdiv(B, TB)
    B_pad = num_tiles * TB
    x_p = jnp.pad(x, ((0, B_pad - B), (0, 0))).astype(compute_dtype)

    needed = resident_bytes + tile_bytes(TB) + (2 << 20)
    vmem_limit = int(min(max(needed, 16 << 20), (9 * cap) // 10))

    def resident(shape):
        # Same block every grid step -> weights/biases stay pinned in VMEM.
        return pl.BlockSpec(shape, lambda i: (0, 0))

    out = pl.pallas_call(
        _mlp_kernel,
        out_shape=jax.ShapeDtypeStruct((num_tiles, 1, TB), jnp.float32),
        grid=(num_tiles,),
        in_specs=[
            pl.BlockSpec((TB, D), lambda i: (i, 0)),  # x streamed, feature dim unpadded
            resident(w1.shape),                        # (D, H1_pad)
            resident(b1.shape),                        # (1, H1_pad)
            resident(w2.shape),                        # (H1_pad, H2_pad)
            resident(b2.shape),                        # (1, H2_pad)
            resident(w3.shape),                        # (H2_pad, OUT_W)
            resident(b3.shape),                        # (1, OUT_W)
        ],
        # Leading grid dim squeezed -> kernel sees a (1, TB) lane-dense block.
        out_specs=pl.BlockSpec((None, 1, TB), lambda i: (i, 0, 0)),
        compiler_params=pltpu.CompilerParams(
            dimension_semantics=("parallel",),         # megacore-shard batch (v7x)
            vmem_limit_bytes=vmem_limit,
        ),
    )(x_p, w1, b1, w2, b2, w3, b3)

    return out.reshape(-1, 1)[:B]


def init_params(key, input_dim, hidden_sizes):
    """Deterministic synthetic init matching nn.Linear shapes (pre-transposed)."""
    h1, h2 = hidden_sizes
    k1, k2, k3, k4, k5, k6 = jax.random.split(key, 6)
    # PyTorch Linear weight is (out, in); store transposed (in, out) for matmul.
    return {
        "w1": jax.random.normal(k1, (input_dim, h1), jnp.float32) * 0.1,
        "b1": jax.random.normal(k2, (1, h1), jnp.float32) * 0.1,
        "w2": jax.random.normal(k3, (h1, h2), jnp.float32) * 0.1,
        "b2": jax.random.normal(k4, (1, h2), jnp.float32) * 0.1,
        "w3": jax.random.normal(k5, (h2, 1), jnp.float32) * 0.1,
        "b3": jax.random.normal(k6, (1, 1), jnp.float32) * 0.1,
    }


def _reference_forward(x, params):
    h1 = jnp.maximum(x @ params["w1"] + params["b1"], 0.0)
    h2 = jnp.maximum(h1 @ params["w2"] + params["b2"], 0.0)
    return h2 @ params["w3"] + params["b3"]


if __name__ == "__main__":
    batch = 8
    input_dim = 16
    hidden_sizes = (32, 32)
    dropout_rate = 0.5  # inference: identity

    key = jax.random.PRNGKey(0)
    kx, kp = jax.random.split(key)
    x = jax.random.normal(kx, (batch, input_dim), jnp.float32)
    params = init_params(kp, input_dim, hidden_sizes)
    ref = _reference_forward(x, params)

    # f32 operand path: exact parity with the reference.
    padded32, meta32 = prepare_params(params, compute_dtype=jnp.float32)
    out32 = jax.block_until_ready(dnn_regressor_forward(x, padded32, meta32))
    assert out32.shape == (batch, 1)
    assert jnp.allclose(out32, ref, atol=1e-5, rtol=1e-5)

    # bf16 operand path (default): halves streamed HBM bytes, f32 accumulation.
    padded16, meta16 = prepare_params(params)  # compute_dtype=jnp.bfloat16
    out16 = jax.block_until_ready(dnn_regressor_forward(x, padded16, meta16))
    assert out16.shape == (batch, 1)
    assert jnp.allclose(out16, ref, atol=5e-2, rtol=5e-2)

    print("KERNEL_OK")
</pallas_src>

<mosaic_0001>
module attributes {stable_mosaic.version = 11 : i64} {
  func.func @_mlp_kernel(%arg0: i32, %arg1: memref<8x16xf32, #tpu.memory_space<vmem>>, %arg2: memref<16x128xf32, #tpu.memory_space<vmem>>, %arg3: memref<1x128xf32, #tpu.memory_space<vmem>>, %arg4: memref<128x128xf32, #tpu.memory_space<vmem>>, %arg5: memref<1x128xf32, #tpu.memory_space<vmem>>, %arg6: memref<128x128xf32, #tpu.memory_space<vmem>>, %arg7: memref<1x128xf32, #tpu.memory_space<vmem>>, %arg8: memref<1x1x8xf32, #tpu.memory_space<vmem>>) attributes {dimension_semantics = [#tpu.dimension_semantics<parallel>], iteration_bounds = array<i64: 1>, scalar_prefetch = 0 : i64, scratch_operands = 0 : i64, tpu.core_type = #tpu.core_type<tc>, window_params = [{transform_indices = @transform_0, window_bounds = array<i64: 8, 16>}, {pipeline_mode = #tpu.pipeline_mode<synchronous>, transform_indices = @transform_1, window_bounds = array<i64: 16, 128>}, {pipeline_mode = #tpu.pipeline_mode<synchronous>, transform_indices = @transform_2, window_bounds = array<i64: 1, 128>}, {pipeline_mode = #tpu.pipeline_mode<synchronous>, transform_indices = @transform_3, window_bounds = array<i64: 128, 128>}, {pipeline_mode = #tpu.pipeline_mode<synchronous>, transform_indices = @transform_4, window_bounds = array<i64: 1, 128>}, {pipeline_mode = #tpu.pipeline_mode<synchronous>, transform_indices = @transform_5, window_bounds = array<i64: 128, 128>}, {pipeline_mode = #tpu.pipeline_mode<synchronous>, transform_indices = @transform_6, window_bounds = array<i64: 1, 128>}, {transform_indices = @transform_7, window_bounds = array<i64: 1, 1, 8>}]} {
    %c0 = arith.constant 0 : index
    %c0_0 = arith.constant 0 : index
    %0 = vector.load %arg1[%c0, %c0_0] : memref<8x16xf32, #tpu.memory_space<vmem>>, vector<8x16xf32>
    %c0_1 = arith.constant 0 : index
    %c0_2 = arith.constant 0 : index
    %1 = vector.load %arg2[%c0_1, %c0_2] : memref<16x128xf32, #tpu.memory_space<vmem>>, vector<16x128xf32>
    %cst = arith.constant dense<0.000000e+00> : vector<8x128xf32>
    %2 = tpu.matmul %0, %1, %cst {dimension_numbers = #tpu.dot_dimension_numbers<[1], [0], [0], [1], [0, 0, 1, 1], [], []>} : vector<8x16xf32>, vector<16x128xf32>, vector<8x128xf32> -> vector<8x128xf32>
    %c0_3 = arith.constant 0 : index
    %c0_4 = arith.constant 0 : index
    %3 = vector.load %arg3[%c0_3, %c0_4] : memref<1x128xf32, #tpu.memory_space<vmem>>, vector<1x128xf32>
    %4 = vector.broadcast %3 : vector<1x128xf32> to vector<8x128xf32>
    %5 = arith.addf %2, %4 : vector<8x128xf32>
    %cst_5 = arith.constant 0.000000e+00 : f32
    %6 = vector.broadcast %cst_5 : f32 to vector<8x128xf32>
    %7 = arith.maximumf %5, %6 : vector<8x128xf32>
    %c0_6 = arith.constant 0 : index
    %c0_7 = arith.constant 0 : index
    %8 = vector.load %arg4[%c0_6, %c0_7] : memref<128x128xf32, #tpu.memory_space<vmem>>, vector<128x128xf32>
    %cst_8 = arith.constant dense<0.000000e+00> : vector<8x128xf32>
    %9 = tpu.matmul %7, %8, %cst_8 {dimension_numbers = #tpu.dot_dimension_numbers<[1], [0], [0], [1], [0, 0, 1, 1], [], []>} : vector<8x128xf32>, vector<128x128xf32>, vector<8x128xf32> -> vector<8x128xf32>
    %c0_9 = arith.constant 0 : index
    %c0_10 = arith.constant 0 : index
    %10 = vector.load %arg5[%c0_9, %c0_10] : memref<1x128xf32, #tpu.memory_space<vmem>>, vector<1x128xf32>
    %11 = vector.broadcast %10 : vector<1x128xf32> to vector<8x128xf32>
    %12 = arith.addf %9, %11 : vector<8x128xf32>
    %cst_11 = arith.constant 0.000000e+00 : f32
    %13 = vector.broadcast %cst_11 : f32 to vector<8x128xf32>
    %14 = arith.maximumf %12, %13 : vector<8x128xf32>
    %c0_12 = arith.constant 0 : index
    %c0_13 = arith.constant 0 : index
    %15 = vector.load %arg6[%c0_12, %c0_13] : memref<128x128xf32, #tpu.memory_space<vmem>>, vector<128x128xf32>
    %cst_14 = arith.constant dense<0.000000e+00> : vector<8x128xf32>
    %16 = tpu.matmul %14, %15, %cst_14 {dimension_numbers = #tpu.dot_dimension_numbers<[1], [0], [0], [1], [0, 0, 1, 1], [], []>} : vector<8x128xf32>, vector<128x128xf32>, vector<8x128xf32> -> vector<8x128xf32>
    %c0_15 = arith.constant 0 : index
    %c0_16 = arith.constant 0 : index
    %17 = vector.load %arg7[%c0_15, %c0_16] : memref<1x128xf32, #tpu.memory_space<vmem>>, vector<1x128xf32>
    %18 = vector.broadcast %17 : vector<1x128xf32> to vector<8x128xf32>
    %19 = arith.addf %16, %18 : vector<8x128xf32>
    %20 = tpu.transpose %19, [1, 0] : vector<8x128xf32> -> vector<128x8xf32>
    %21 = vector.extract_strided_slice %20 {offsets = [0, 0], sizes = [1, 8], strides = [1, 1]} : vector<128x8xf32> to vector<1x8xf32>
    %c0_17 = arith.constant 0 : index
    %c0_18 = arith.constant 0 : index
    %c0_19 = arith.constant 0 : index
    %22 = vector.load %arg8[%c0_17, %c0_18, %c0_19] : memref<1x1x8xf32, #tpu.memory_space<vmem>>, vector<1x1x8xf32>
    %23 = vector.shape_cast %22 : vector<1x1x8xf32> to vector<1x8xf32>
    %24 = vector.shape_cast %21 : vector<1x8xf32> to vector<1x1x8xf32>
    tpu.vector_store %arg8[%c0_17, %c0_18, %c0_19], %24 {strides = array<i32>} : memref<1x1x8xf32, #tpu.memory_space<vmem>>, vector<1x1x8xf32>,
    return
  }
  func.func @transform_0(%arg0: i32) -> (i32, i32) {
    %c0_i32 = arith.constant 0 : i32
    %c0_i32_0 = arith.constant 0 : i32
    return %arg0, %c0_i32 : i32, i32
  }
  func.func @transform_1(%arg0: i32) -> (i32, i32) {
    %c0_i32 = arith.constant 0 : i32
    %c0_i32_0 = arith.constant 0 : i32
    %c0_i32_1 = arith.constant 0 : i32
    return %c0_i32, %c0_i32_0 : i32, i32
  }
  func.func @transform_2(%arg0: i32) -> (i32, i32) {
    %c0_i32 = arith.constant 0 : i32
    %c0_i32_0 = arith.constant 0 : i32
    %c0_i32_1 = arith.constant 0 : i32
    return %c0_i32, %c0_i32_0 : i32, i32
  }
  func.func @transform_3(%arg0: i32) -> (i32, i32) {
    %c0_i32 = arith.constant 0 : i32
    %c0_i32_0 = arith.constant 0 : i32
    %c0_i32_1 = arith.constant 0 : i32
    return %c0_i32, %c0_i32_0 : i32, i32
  }
  func.func @transform_4(%arg0: i32) -> (i32, i32) {
    %c0_i32 = arith.constant 0 : i32
    %c0_i32_0 = arith.constant 0 : i32
    %c0_i32_1 = arith.constant 0 : i32
    return %c0_i32, %c0_i32_0 : i32, i32
  }
  func.func @transform_5(%arg0: i32) -> (i32, i32) {
    %c0_i32 = arith.constant 0 : i32
    %c0_i32_0 = arith.constant 0 : i32
    %c0_i32_1 = arith.constant 0 : i32
    return %c0_i32, %c0_i32_0 : i32, i32
  }
  func.func @transform_6(%arg0: i32) -> (i32, i32) {
    %c0_i32 = arith.constant 0 : i32
    %c0_i32_0 = arith.constant 0 : i32
    %c0_i32_1 = arith.constant 0 : i32
    return %c0_i32, %c0_i32_0 : i32, i32
  }
  func.func @transform_7(%arg0: i32) -> (i32, i32, i32) {
    %c0_i32 = arith.constant 0 : i32
    %c0_i32_0 = arith.constant 0 : i32
    %c0_i32_1 = arith.constant 0 : i32
    return %arg0, %c0_i32, %c0_i32_0 : i32, i32, i32
  }
}

</mosaic_0001>

<llo_original>
// kernel: tpu_custom_call.1
$region0: #{tpu_custom_call.1}
  #allocation0 [shape = 'u32[]', space=smem, size = 0x4, offset = 0x4, fixed_abs, tag = 'smem constant byte address 0x4 - core index']
  #allocation1 [shape = 'u32[72,128]{1,0:T(1,128)}', space=vmem, size = 0x9000, scoped, tag = 'internal scratch']
  %s0 = inlined_call_operand.hbm [shape: f32[8,16], index: 0, kind: input, shape index: {}]
  %s1 = inlined_call_operand.hbm [shape: f32[16,128], index: 1, kind: input, shape index: {}]
  %s2 = inlined_call_operand.vmem [shape: f32[1,128], index: 2, kind: input, shape index: {}]
  %s3 = inlined_call_operand.hbm [shape: f32[128,128], index: 3, kind: input, shape index: {}]
  %s4 = inlined_call_operand.vmem [shape: f32[1,128], index: 4, kind: input, shape index: {}]
  %s5 = inlined_call_operand.hbm [shape: f32[128,128], index: 5, kind: input, shape index: {}]
  %s6 = inlined_call_operand.vmem [shape: f32[1,128], index: 6, kind: input, shape index: {}]
  %s7 = inlined_call_operand.hbm [shape: f32[1,1,8], index: 7, kind: output, shape index: {}]
  %s8 = sld [smem:[#allocation0]]
  $region54: #{tpu_custom_call.1} parent=0
    _
  %s10 = ssub.s32 1, %s8
  %s11 = scalar_select 0, %s10, %s8
  $region1: #{tpu_custom_call.1} parent=0
    #allocation2 [shape = 'u8[4096]{0}', space=vmem, size = 0x1000, scoped, tag = 'input window, operand 0, single buffered']
    #allocation3 [shape = 's32[1]{0}', space=sflag, size = 0x4, scoped, tag = 'scoped memory for tpu_custom_call.1']
    #allocation4 [shape = 's32[1]{0}', space=sflag, size = 0x4, scoped, tag = 'scoped memory for tpu_custom_call.1']
    #allocation5 [shape = 'u8[8192]{0}', space=vmem, size = 0x2000, scoped, tag = 'input window, operand 1, single buffered']
    #allocation6 [shape = 's32[1]{0}', space=sflag, size = 0x4, scoped, tag = 'scoped memory for tpu_custom_call.1']
    #allocation7 [shape = 'u8[65536]{0}', space=vmem, size = 0x10000, scoped, tag = 'input window, operand 3, single buffered']
    #allocation8 [shape = 'u8[65536]{0}', space=vmem, size = 0x10000, scoped, tag = 'input window, operand 5, single buffered']
    #allocation9 [shape = 's32[1]{0}', space=sflag, size = 0x4, scoped, tag = 'scoped memory for tpu_custom_call.1']
    #allocation10 [shape = 'u8[512]{0}', space=vmem, size = 0x400, scoped, tag = 'output window, operand 0, single buffered']
    %12 = vsyncpa [#allocation3], 0
    %13 = vsyncpa [#allocation6], 0
    %14 = vsyncpa [#allocation9], 0
    %15 = vsyncpa [#allocation4], 0
    // Predicated region
    $region2: #{tpu_custom_call.1} parent=1 // pred_check
      _
    $region3: #{tpu_custom_call.1} parent=1 // pred_check_branch
      %17 = sbr.rel (0) target = $region5
    $region4: #{tpu_custom_call.1} parent=1 // pred_region
      %19 = vsyncadd [#allocation3], 0
      %s21 = sshll.u32 %s0, 4
      %s22 = int_to_ptr.hbm [resolvable:$true] %s21
      %s23 = sshll.u32 [#allocation2], 4
      %s24 = int_to_ptr.vmem [resolvable:$true] %s23
      %26 = dma.hbm_to_vmem [thread:$0]  %s22, 128, %s24, [#allocation3]
    $region5: #{tpu_custom_call.1} parent=1 // pred_fallthru
      _
    // Predicated region
    $region6: #{tpu_custom_call.1} parent=1 // pred_check
      _
    $region7: #{tpu_custom_call.1} parent=1 // pred_check_branch
      %28 = sbr.rel (0) target = $region9
    $region8: #{tpu_custom_call.1} parent=1 // pred_region
      %30 = vsyncadd [#allocation6], 0
      %s31 = sshll.u32 %s1, 4
      %s32 = int_to_ptr.hbm [resolvable:$true] %s31
      %s33 = sshll.u32 [#allocation5], 4
      %s34 = int_to_ptr.vmem [resolvable:$true] %s33
      %39 = dma.hbm_to_vmem [thread:$0]  %s32, 256, %s34, [#allocation6], 128, 128, 8
    $region9: #{tpu_custom_call.1} parent=1 // pred_fallthru
      _
    // Predicated region
    $region10: #{tpu_custom_call.1} parent=1 // pred_check
      _
    $region11: #{tpu_custom_call.1} parent=1 // pred_check_branch
      %41 = sbr.rel (0) target = $region13
    $region12: #{tpu_custom_call.1} parent=1 // pred_region
      _
    $region13: #{tpu_custom_call.1} parent=1 // pred_fallthru
      _
    // Predicated region
    $region14: #{tpu_custom_call.1} parent=1 // pred_check
      _
    $region15: #{tpu_custom_call.1} parent=1 // pred_check_branch
      %43 = sbr.rel (0) target = $region17
    $region16: #{tpu_custom_call.1} parent=1 // pred_region
      %45 = vsyncadd [#allocation6], 0
      %s46 = sshll.u32 %s3, 4
      %s47 = int_to_ptr.hbm [resolvable:$true] %s46
      %s48 = sshll.u32 [#allocation7], 4
      %s49 = int_to_ptr.vmem [resolvable:$true] %s48
      %54 = dma.hbm_to_vmem [thread:$0]  %s47, 2048, %s49, [#allocation6], 128, 128, 8
    $region17: #{tpu_custom_call.1} parent=1 // pred_fallthru
      _
    // Predicated region
    $region18: #{tpu_custom_call.1} parent=1 // pred_check
      _
    $region19: #{tpu_custom_call.1} parent=1 // pred_check_branch
      %56 = sbr.rel (0) target = $region21
    $region20: #{tpu_custom_call.1} parent=1 // pred_region
      _
    $region21: #{tpu_custom_call.1} parent=1 // pred_fallthru
      _
    // Predicated region
    $region22: #{tpu_custom_call.1} parent=1 // pred_check
      _
    $region23: #{tpu_custom_call.1} parent=1 // pred_check_branch
      %58 = sbr.rel (0) target = $region25
    $region24: #{tpu_custom_call.1} parent=1 // pred_region
      %60 = vsyncadd [#allocation9], 0
      %s61 = sshll.u32 %s5, 4
      %s62 = int_to_ptr.hbm [resolvable:$true] %s61
      %s63 = sshll.u32 [#allocation8], 4
      %s64 = int_to_ptr.vmem [resolvable:$true] %s63
      %69 = dma.hbm_to_vmem [thread:$0]  %s62, 2048, %s64, [#allocation9], 128, 128, 8
    $region25: #{tpu_custom_call.1} parent=1 // pred_fallthru
      _
    // Predicated region
    $region26: #{tpu_custom_call.1} parent=1 // pred_check
      _
    $region27: #{tpu_custom_call.1} parent=1 // pred_check_branch
      %71 = sbr.rel (0) target = $region29
    $region28: #{tpu_custom_call.1} parent=1 // pred_region
      _
    $region29: #{tpu_custom_call.1} parent=1 // pred_fallthru
      _
    // Predicated region
    $region30: #{tpu_custom_call.1} parent=1 // pred_check
      _
    $region31: #{tpu_custom_call.1} parent=1 // pred_check_branch
      %73 = sbr.rel (0) target = $region33
    $region32: #{tpu_custom_call.1} parent=1 // pred_region
      %75 = dma.done [#allocation3], 128
    $region33: #{tpu_custom_call.1} parent=1 // pred_fallthru
      _
    // Predicated region
    $region34: #{tpu_custom_call.1} parent=1 // pred_check
      _
    $region35: #{tpu_custom_call.1} parent=1 // pred_check_branch
      %77 = sbr.rel (0) target = $region37
    $region36: #{tpu_custom_call.1} parent=1 // pred_region
      %79 = dma.done [#allocation6], 256
    $region37: #{tpu_custom_call.1} parent=1 // pred_fallthru
      _
    // Predicated region
    $region38: #{tpu_custom_call.1} parent=1 // pred_check
      _
    $region39: #{tpu_custom_call.1} parent=1 // pred_check_branch
      %81 = sbr.rel (0) target = $region41
    $region40: #{tpu_custom_call.1} parent=1 // pred_region
      %83 = dma.done [#allocation6], 2048
    $region41: #{tpu_custom_call.1} parent=1 // pred_fallthru
      _
    // Predicated region
    $region42: #{tpu_custom_call.1} parent=1 // pred_check
      _
    $region43: #{tpu_custom_call.1} parent=1 // pred_check_branch
      %85 = sbr.rel (0) target = $region45
    $region44: #{tpu_custom_call.1} parent=1 // pred_region
      %87 = dma.done [#allocation9], 2048
    $region45: #{tpu_custom_call.1} parent=1 // pred_fallthru
      _
    %v88 = vld [vmem:[#allocation2] sm:$0xff]
    %v89 = vld [vmem:[#allocation5] sm:$0xff]
    %v90 = vld [vmem:[#allocation5 + $0x8] sm:$0xff]
    %v91 = vld [vmem:[%s2] sm:$0x1]
    %v93 = vperm.slane %v91, 0
    %vm95 = vcmask 130048
    %v97 = vsel %vm95, %v88, 0
    %99 = vmatpush.msra.mxu0 0.0
    %100 = vmatpush.msra.mxu0 0.0
    %101 = vmatpush.msra.mxu0 0.0
    %102 = vmatpush.msra.mxu0 0.0
    %103 = vmatpush.msra.mxu0 0.0
    %104 = vmatpush.msra.mxu0 0.0
    %105 = vmatpush.msra.mxu0 0.0
    %106 = vmatpush.msra.mxu0 0.0
    %107 = vmatpush.msra.mxu0 0.0
    %108 = vmatpush.msra.mxu0 0.0
    %109 = vmatpush.msra.mxu0 0.0
    %110 = vmatpush.msra.mxu0 0.0
    %111 = vmatpush.msra.mxu0 0.0
    %112 = vmatpush.msra.mxu0 0.0
    %113 = vmatpush.msra.mxu0 %v90
    %114 = vmatpush.msra.mxu0 %v89
    %115 = vmatmul.f32.gmra.mxu0 %v97
    %v116 = vpop.f32.mrf.mxu0
    %v117 = vadd.f32 %v93, %v116
    %118 = vdwg.mxu0
    %v119 = vmax.f32 %v117, 0.0
    %v120 = vld [vmem:[#allocation7] sm:$0xff]
    %v121 = vld [vmem:[#allocation7 + $0x8] sm:$0xff]
    %v122 = vld [vmem:[#allocation7 + $0x10] sm:$0xff]
    %v123 = vld [vmem:[#allocation7 + $0x18] sm:$0xff]
    %v124 = vld [vmem:[#allocation7 + $0x20] sm:$0xff]
    %v125 = vld [vmem:[#allocation7 + $0x28] sm:$0xff]
    %v126 = vld [vmem:[#allocation7 + $0x30] sm:$0xff]
    %v127 = vld [vmem:[#allocation7 + $0x38] sm:$0xff]
    %v128 = vld [vmem:[#allocation7 + $0x40] sm:$0xff]
    %v129 = vld [vmem:[#allocation7 + $0x48] sm:$0xff]
    %v130 = vld [vmem:[#allocation7 + $0x50] sm:$0xff]
    %v131 = vld [vmem:[#allocation7 + $0x58] sm:$0xff]
    %v132 = vld [vmem:[#allocation7 + $0x60] sm:$0xff]
    %v133 = vld [vmem:[#allocation7 + $0x68] sm:$0xff]
    %v134 = vld [vmem:[#allocation7 + $0x70] sm:$0xff]
    %v135 = vld [vmem:[#allocation7 + $0x78] sm:$0xff]
    %v136 = vld [vmem:[%s4] sm:$0x1]
    %v138 = vperm.slane %v136, 0
    %140 = vmatpush.msra.mxu0 %v135
    %141 = vmatpush.msra.mxu0 %v134
    %142 = vmatpush.msra.mxu0 %v133
    %143 = vmatpush.msra.mxu0 %v132
    %144 = vmatpush.msra.mxu0 %v131
    %145 = vmatpush.msra.mxu0 %v130
    %146 = vmatpush.msra.mxu0 %v129
    %147 = vmatpush.msra.mxu0 %v128
    %148 = vmatpush.msra.mxu0 %v127
    %149 = vmatpush.msra.mxu0 %v126
    %150 = vmatpush.msra.mxu0 %v125
    %151 = vmatpush.msra.mxu0 %v124
    %152 = vmatpush.msra.mxu0 %v123
    %153 = vmatpush.msra.mxu0 %v122
    %154 = vmatpush.msra.mxu0 %v121
    %155 = vmatpush.msra.mxu0 %v120
    %156 = vmatmul.f32.gmra.mxu0 %v119
    %v157 = vpop.f32.mrf.mxu0
    %v158 = vadd.f32 %v138, %v157
    %159 = vdwg.mxu0
    %v160 = vmax.f32 %v158, 0.0
    %v161 = vld [vmem:[#allocation8] sm:$0xff]
    %v162 = vld [vmem:[#allocation8 + $0x8] sm:$0xff]
    %v163 = vld [vmem:[#allocation8 + $0x10] sm:$0xff]
    %v164 = vld [vmem:[#allocation8 + $0x18] sm:$0xff]
    %v165 = vld [vmem:[#allocation8 + $0x20] sm:$0xff]
    %v166 = vld [vmem:[#allocation8 + $0x28] sm:$0xff]
    %v167 = vld [vmem:[#allocation8 + $0x30] sm:$0xff]
    %v168 = vld [vmem:[#allocation8 + $0x38] sm:$0xff]
    %v169 = vld [vmem:[#allocation8 + $0x40] sm:$0xff]
    %v170 = vld [vmem:[#allocation8 + $0x48] sm:$0xff]
    %v171 = vld [vmem:[#allocation8 + $0x50] sm:$0xff]
    %v172 = vld [vmem:[#allocation8 + $0x58] sm:$0xff]
    %v173 = vld [vmem:[#allocation8 + $0x60] sm:$0xff]
    %v174 = vld [vmem:[#allocation8 + $0x68] sm:$0xff]
    %v175 = vld [vmem:[#allocation8 + $0x70] sm:$0xff]
    %v176 = vld [vmem:[#allocation8 + $0x78] sm:$0xff]
    %v177 = vld [vmem:[%s6] sm:$0x1]
    %v179 = vperm.slane %v177, 0
    %181 = vmatpush.msra.mxu0 %v176
    %182 = vmatpush.msra.mxu0 %v175
    %183 = vmatpush.msra.mxu0 %v174
    %184 = vmatpush.msra.mxu0 %v173
    %185 = vmatpush.msra.mxu0 %v172
    %186 = vmatpush.msra.mxu0 %v171
    %187 = vmatpush.msra.mxu0 %v170
    %188 = vmatpush.msra.mxu0 %v169
    %189 = vmatpush.msra.mxu0 %v168
    %190 = vmatpush.msra.mxu0 %v167
    %191 = vmatpush.msra.mxu0 %v166
    %192 = vmatpush.msra.mxu0 %v165
    %193 = vmatpush.msra.mxu0 %v164
    %194 = vmatpush.msra.mxu0 %v163
    %195 = vmatpush.msra.mxu0 %v162
    %196 = vmatpush.msra.mxu0 %v161
    %197 = vmatmul.f32.gmra.mxu0 %v160
    %v198 = vpop.f32.mrf.mxu0
    %v199 = vadd.f32 %v179, %v198
    %200 = vdwg.mxu0
    %201 = vxpose.xlu0.b32.start [1/16] %v199, 128
    %202 = vxpose.xlu0.b32.cont [2/16] 0.0, 128
    %203 = vxpose.xlu0.b32.cont [3/16] 0.0, 128
    %204 = vxpose.xlu0.b32.cont [4/16] 0.0, 128
    %205 = vxpose.xlu0.b32.cont [5/16] 0.0, 128
    %206 = vxpose.xlu0.b32.cont [6/16] 0.0, 128
    %207 = vxpose.xlu0.b32.cont [7/16] 0.0, 128
    %208 = vxpose.xlu0.b32.cont [8/16] 0.0, 128
    %209 = vxpose.xlu0.b32.cont [9/16] 0.0, 128
    %210 = vxpose.xlu0.b32.cont [10/16] 0.0, 128
    %211 = vxpose.xlu0.b32.cont [11/16] 0.0, 128
    %212 = vxpose.xlu0.b32.cont [12/16] 0.0, 128
    %213 = vxpose.xlu0.b32.cont [13/16] 0.0, 128
    %214 = vxpose.xlu0.b32.cont [14/16] 0.0, 128
    %215 = vxpose.xlu0.b32.cont [15/16] 0.0, 128
    %216 = vxpose.xlu0.b32.end [16/16] 0.0, 128
    %v217 = vpop.trf.xlu0
    %v218 = vpop.trf.xlu0
    %v219 = vpop.trf.xlu0
    %v220 = vpop.trf.xlu0
    %v221 = vpop.trf.xlu0
    %v222 = vpop.trf.xlu0
    %v223 = vpop.trf.xlu0
    %v224 = vpop.trf.xlu0
    %v225 = vpop.trf.xlu0
    %v226 = vpop.trf.xlu0
    %v227 = vpop.trf.xlu0
    %v228 = vpop.trf.xlu0
    %v229 = vpop.trf.xlu0
    %v230 = vpop.trf.xlu0
    %v231 = vpop.trf.xlu0
    %v232 = vpop.trf.xlu0
    %vm233 = vcmask 57344
    %234 = vst.msk [vmem:[#allocation10] sm:$0x1] %vm233, %v217
    // Predicated region
    $region46: #{tpu_custom_call.1} parent=1 // pred_check
      _
    $region47: #{tpu_custom_call.1} parent=1 // pred_check_branch
      %236 = sbr.rel (0) target = $region49
    $region48: #{tpu_custom_call.1} parent=1 // pred_region
      %238 = vsyncadd [#allocation4], 0
      %s240 = sshll.u32 [#allocation10], 4
      %s241 = int_to_ptr.vmem [resolvable:$true] %s240
      %s242 = sshll.u32 %s7, 4
      %s243 = int_to_ptr.hbm [resolvable:$true] %s242
      %245 = dma.vmem_to_hbm [thread:$0]  %s241, 16, %s243, [#allocation4]
    $region49: #{tpu_custom_call.1} parent=1 // pred_fallthru
      _
    // Predicated region
    $region50: #{tpu_custom_call.1} parent=1 // pred_check
      _
    $region51: #{tpu_custom_call.1} parent=1 // pred_check_branch
      %247 = sbr.rel (0) target = $region53
    $region52: #{tpu_custom_call.1} parent=1 // pred_region
      %249 = dma.done [#allocation4], 16
    $region53: #{tpu_custom_call.1} parent=1 // pred_fallthru
      _
    %250 = vsyncpa [#allocation3], 1
    %251 = vsyncpa [#allocation6], 1
    %252 = vsyncpa [#allocation9], 1
    %253 = vsyncpa [#allocation4], 1

</llo_original>
